<compile_context>
chip_gen: v5e
topology: v5e:2x2
jax: 0.10.0
libtpu: 0.0.40
codegen_flags: <defaults>
</compile_context>

<pallas_src>
import functools

import jax
import jax.numpy as jnp
from jax import lax
from jax.experimental import pallas as pl
from jax.experimental.pallas import tpu as pltpu

EPS = 1e-4  # LayerNorm eps from the PyTorch module (LayerNorm(channels, eps=0.0001))


def dp_kernel(x_ref, mask_ref, w1_ref, w2_ref, cols_ref, out_ref,
              *, k, T, n_lanes, conv_dtype):
    """DurationPredictor forward on one lane-merged block.

    x_ref    : (C_in, n_lanes)   n_lanes = block_b * T (batch rows merged on lanes)
    mask_ref : (1, n_lanes)
    w1_ref   : (C_f, k*C_in)     im2col-flattened conv_1 weight
    w2_ref   : (C_f, k*C_f)      im2col-flattened conv_2 weight
    cols_ref : (C_f, 8)          packed columns: b1 g1 be1 b2 g2 be2 wp bp
    out_ref  : (1, n_lanes)
    """
    pad = k // 2

    # Position within each T-long row segment.  Conv taps must not leak across
    # the batch rows that were merged along the lane axis, so tap validity is
    # computed from (t % T), not the global lane index.
    t_seg = lax.broadcasted_iota(jnp.int32, (1, n_lanes), 1) % T
    edge = []
    for j in range(k):
        s = j - pad
        if s == 0:
            edge.append(None)
        else:
            valid = jnp.logical_and(t_seg + s >= 0, t_seg + s < T)
            edge.append(valid.astype(jnp.float32))

    w1 = w1_ref[...].astype(conv_dtype)
    w2 = w2_ref[...].astype(conv_dtype)
    cols = cols_ref[...]
    b1, g1, be1 = cols[:, 0:1], cols[:, 1:2], cols[:, 2:3]
    b2, g2, be2 = cols[:, 3:4], cols[:, 4:5], cols[:, 5:6]
    wp = cols[:, 6:7]
    bp = cols[0:1, 7:8]
    cf = w1.shape[0]

    def conv_same(h, w_flat, b_col):
        """'same'-padded conv1d as ONE fused MXU matmul over the merged lanes."""
        taps = []
        for j in range(k):                           # static unroll over taps
            s = j - pad
            if s == 0:
                taps.append(h)
            else:
                # rolled[t] = h[t + s]; out-of-segment taps zeroed by edge[j].
                rolled = pltpu.roll(h, (-s) % n_lanes, axis=1)
                taps.append(rolled * edge[j])
        stacked = jnp.concatenate(taps, axis=0)      # (k*C, n_lanes) im2col stack
        acc = jnp.dot(w_flat, stacked.astype(conv_dtype),
                      preferred_element_type=jnp.float32)
        return acc + b_col

    def channel_layer_norm(h, gamma, beta):
        # Channel axis == sublane axis; (h - mean) reused for var and normalize.
        mean = jnp.mean(h, axis=0, keepdims=True)
        diff = h - mean
        var = jnp.mean(diff * diff, axis=0, keepdims=True)
        return diff * lax.rsqrt(var + EPS) * gamma + beta

    x = x_ref[...].astype(jnp.float32)               # (C_in, n_lanes)
    m = mask_ref[...].astype(jnp.float32)            # (1, n_lanes)
    m_cf = jnp.broadcast_to(m, (cf, n_lanes))        # hoisted, reused twice

    # conv_1(x * mask) -> relu -> norm_1
    h = conv_same(x * m, w1, b1)
    h = jnp.maximum(h, 0.0)
    h = channel_layer_norm(h, g1, be1)
    # TODO(synk): dropout omitted (inference-mode identity).

    # conv_2(h * mask) -> relu -> norm_2
    h = conv_same(h * m_cf, w2, b2)
    h = jnp.maximum(h, 0.0)
    h = channel_layer_norm(h, g2, be2)

    # 1x1 projection to one channel == weighted sublane reduction.
    y = jnp.sum((h * m_cf) * wp, axis=0, keepdims=True) + bp     # (1, n_lanes)
    out_ref[...] = (y * m).astype(out_ref.dtype)                 # one lane-dense store


def duration_predictor(x, x_mask, params, *, block_b=None, conv_dtype=jnp.float32):
    """x: (B, C_in, T) f32, x_mask: (B, 1, T) f32 -> logw: (B, 1, T) f32."""
    B, cin, T = x.shape
    cf, _, k = params["w1"].shape
    assert k % 2 == 1, "symmetric 'same' padding requires an odd kernel size"
    if block_b is None:
        block_b = B                 # grid=(1,): best on single-TC v5e/v6e
    assert B % block_b == 0, "block_b must divide the batch"
    n_steps = B // block_b
    n_lanes = block_b * T
    if n_steps > 1:
        assert n_lanes % 128 == 0, "lane block must be a multiple of 128 when tiled"

    # Merge batch rows along the lane axis: (B, C, T) -> (C, B*T), (B,1,T) -> (1, B*T).
    x_flat = jnp.transpose(x, (1, 0, 2)).reshape(cin, B * T)
    m_flat = jnp.transpose(x_mask, (1, 0, 2)).reshape(1, B * T)

    # im2col-flattened conv weights: w_flat[o, j*C + i] = W_pt[o, i, j].
    w1_flat = jnp.transpose(params["w1"], (0, 2, 1)).reshape(cf, k * cin)
    w2_flat = jnp.transpose(params["w2"], (0, 2, 1)).reshape(cf, k * cf)

    # Pack the eight tiny per-channel parameter columns into ONE (cf, 8) ref.
    def col(v):
        return jnp.reshape(v, (-1, 1)).astype(jnp.float32)
    cols = jnp.concatenate([
        col(params["b1"]), col(params["g1"]), col(params["be1"]),
        col(params["b2"]), col(params["g2"]), col(params["be2"]),
        col(params["wp"]),
        jnp.broadcast_to(jnp.reshape(params["bp"], (1, 1)), (cf, 1)).astype(jnp.float32),
    ], axis=1)

    lane_map = lambda i: (0, i)
    rep = lambda i: (0, 0)
    in_specs = [
        pl.BlockSpec((cin, n_lanes), lane_map),     # x (lane-merged)
        pl.BlockSpec((1, n_lanes), lane_map),       # mask (lane-merged)
        pl.BlockSpec((cf, k * cin), rep),           # w1 (flattened taps)
        pl.BlockSpec((cf, k * cf), rep),            # w2 (flattened taps)
        pl.BlockSpec((cf, 8), rep),                 # packed columns
    ]
    out_specs = pl.BlockSpec((1, n_lanes), lane_map)

    kernel = functools.partial(dp_kernel, k=k, T=T, n_lanes=n_lanes,
                               conv_dtype=conv_dtype)
    out_flat = pl.pallas_call(
        kernel,
        grid=(n_steps,),
        in_specs=in_specs,
        out_specs=out_specs,
        out_shape=jax.ShapeDtypeStruct((1, B * T), jnp.float32),
        compiler_params=pltpu.CompilerParams(dimension_semantics=("parallel",)),
    )(x_flat, m_flat, w1_flat, w2_flat, cols)

    return jnp.transpose(out_flat.reshape(1, B, T), (1, 0, 2))


def ref_forward(x, x_mask, p, k):
    """Pure-JAX reference mirroring the PyTorch DurationPredictor (NCW layout)."""
    def conv(h, w, b, pad):
        y = lax.conv_general_dilated(
            h, w, (1,), [(pad, pad)],
            dimension_numbers=("NCH", "OIH", "NCH"),
            precision=lax.Precision.HIGHEST)
        return y + b.reshape(1, -1, 1)

    def ln(h, g, be):
        mean = jnp.mean(h, axis=1, keepdims=True)
        var = jnp.mean((h - mean) ** 2, axis=1, keepdims=True)
        return (h - mean) * lax.rsqrt(var + EPS) * g.reshape(1, -1, 1) + be.reshape(1, -1, 1)

    h = conv(x * x_mask, p["w1"], p["b1"], k // 2)
    h = jnp.maximum(h, 0.0)
    h = ln(h, p["g1"], p["be1"])
    h = conv(h * x_mask, p["w2"], p["b2"], k // 2)
    h = jnp.maximum(h, 0.0)
    h = ln(h, p["g2"], p["be2"])
    y = conv(h * x_mask, p["wp"], p["bp"], 0)
    return y * x_mask


if __name__ == "__main__":
    B, T = 4, 128
    C_IN, C_F, K = 8, 16, 3

    key = jax.random.PRNGKey(0)
    ks = jax.random.split(key, 12)

    params = {
        "w1": jax.random.normal(ks[0], (C_F, C_IN, K), jnp.float32) * 0.1,
        "b1": jax.random.normal(ks[1], (C_F,), jnp.float32) * 0.1,
        "g1": 1.0 + 0.1 * jax.random.normal(ks[2], (C_F,), jnp.float32),
        "be1": 0.1 * jax.random.normal(ks[3], (C_F,), jnp.float32),
        "w2": jax.random.normal(ks[4], (C_F, C_F, K), jnp.float32) * 0.1,
        "b2": jax.random.normal(ks[5], (C_F,), jnp.float32) * 0.1,
        "g2": 1.0 + 0.1 * jax.random.normal(ks[6], (C_F,), jnp.float32),
        "be2": 0.1 * jax.random.normal(ks[7], (C_F,), jnp.float32),
        "wp": jax.random.normal(ks[8], (1, C_F, 1), jnp.float32) * 0.1,
        "bp": jax.random.normal(ks[9], (1,), jnp.float32) * 0.1,
    }

    x = jax.random.normal(ks[10], (B, C_IN, T), jnp.float32)          # (B, C, T)
    lengths = jnp.array([T, T - 17, T // 2, 5], jnp.int32)
    x_mask = (jnp.arange(T)[None, :] < lengths[:, None]).astype(jnp.float32)[:, None, :]

    # Default: block_b=B -> grid=(1,).  (On v7x one may benchmark block_b=B//2
    # to shard the grid across both TensorCores.)
    out = duration_predictor(x, x_mask, params)
    jax.block_until_ready(out)

    ref = ref_forward(x, x_mask, params, K)
    assert out.shape == (B, 1, T)
    err = jnp.max(jnp.abs(out - ref))
    assert jnp.allclose(out, ref, atol=2e-4, rtol=2e-4), f"max abs err {err}"

    print("KERNEL_OK")
</pallas_src>

<mosaic_0001>
module attributes {stable_mosaic.version = 11 : i64} {
  func.func @dp_kernel(%arg0: i32, %arg1: memref<8x512xf32, #tpu.memory_space<vmem>>, %arg2: memref<1x512xf32, #tpu.memory_space<vmem>>, %arg3: memref<16x24xf32, #tpu.memory_space<vmem>>, %arg4: memref<16x48xf32, #tpu.memory_space<vmem>>, %arg5: memref<16x8xf32, #tpu.memory_space<vmem>>, %arg6: memref<1x512xf32, #tpu.memory_space<vmem>>) attributes {dimension_semantics = [#tpu.dimension_semantics<parallel>], iteration_bounds = array<i64: 1>, scalar_prefetch = 0 : i64, scratch_operands = 0 : i64, tpu.core_type = #tpu.core_type<tc>, window_params = [{transform_indices = @transform_0, window_bounds = array<i64: 8, 512>}, {transform_indices = @transform_1, window_bounds = array<i64: 1, 512>}, {pipeline_mode = #tpu.pipeline_mode<synchronous>, transform_indices = @transform_2, window_bounds = array<i64: 16, 24>}, {pipeline_mode = #tpu.pipeline_mode<synchronous>, transform_indices = @transform_3, window_bounds = array<i64: 16, 48>}, {pipeline_mode = #tpu.pipeline_mode<synchronous>, transform_indices = @transform_4, window_bounds = array<i64: 16, 8>}, {transform_indices = @transform_5, window_bounds = array<i64: 1, 512>}]} {
    %0 = tpu.iota {dimensions = array<i32: 1>} : vector<1x512xi32>
    %c128_i32 = arith.constant 128 : i32
    %c0_i32 = arith.constant 0 : i32
    %1 = arith.cmpi eq, %c128_i32, %c0_i32 : i32
    %c1_i32 = arith.constant 1 : i32
    %2 = arith.select %1, %c1_i32, %c128_i32 : i32
    %3 = vector.broadcast %2 : i32 to vector<1x512xi32>
    %4 = arith.remsi %0, %3 : vector<1x512xi32>
    %c0_i32_0 = arith.constant 0 : i32
    %5 = vector.broadcast %c0_i32_0 : i32 to vector<1x512xi32>
    %6 = arith.cmpi ne, %4, %5 : vector<1x512xi32>
    %c0_i32_1 = arith.constant 0 : i32
    %7 = vector.broadcast %c0_i32_1 : i32 to vector<1x512xi32>
    %8 = arith.cmpi slt, %4, %7 : vector<1x512xi32>
    %c0_i32_2 = arith.constant 0 : i32
    %9 = arith.cmpi slt, %2, %c0_i32_2 : i32
    %10 = vector.broadcast %9 : i1 to vector<1x512xi1>
    %11 = vector.broadcast %10 : vector<1x512xi1> to vector<1x512xi1>
    %12 = arith.xori %8, %11 : vector<1x512xi1>
    %13 = arith.andi %12, %6 : vector<1x512xi1>
    %14 = vector.broadcast %2 : i32 to vector<1x512xi32>
    %15 = arith.addi %4, %14 : vector<1x512xi32>
    %16 = arith.select %13, %15, %4 : vector<1x512xi1>, vector<1x512xi32>
    %c-1_i32 = arith.constant -1 : i32
    %17 = vector.broadcast %c-1_i32 : i32 to vector<1x512xi32>
    %18 = arith.addi %16, %17 : vector<1x512xi32>
    %c0_i32_3 = arith.constant 0 : i32
    %19 = vector.broadcast %c0_i32_3 : i32 to vector<1x512xi32>
    %20 = arith.cmpi sge, %18, %19 : vector<1x512xi32>
    %c-1_i32_4 = arith.constant -1 : i32
    %21 = vector.broadcast %c-1_i32_4 : i32 to vector<1x512xi32>
    %22 = arith.addi %16, %21 : vector<1x512xi32>
    %c128_i32_5 = arith.constant 128 : i32
    %23 = vector.broadcast %c128_i32_5 : i32 to vector<1x512xi32>
    %24 = arith.cmpi slt, %22, %23 : vector<1x512xi32>
    %25 = arith.andi %20, %24 : vector<1x512xi1>
    %26 = arith.extui %25 : vector<1x512xi1> to vector<1x512xi32>
    %27 = arith.sitofp %26 : vector<1x512xi32> to vector<1x512xf32>
    %c1_i32_6 = arith.constant 1 : i32
    %28 = vector.broadcast %c1_i32_6 : i32 to vector<1x512xi32>
    %29 = arith.addi %16, %28 : vector<1x512xi32>
    %c0_i32_7 = arith.constant 0 : i32
    %30 = vector.broadcast %c0_i32_7 : i32 to vector<1x512xi32>
    %31 = arith.cmpi sge, %29, %30 : vector<1x512xi32>
    %c1_i32_8 = arith.constant 1 : i32
    %32 = vector.broadcast %c1_i32_8 : i32 to vector<1x512xi32>
    %33 = arith.addi %16, %32 : vector<1x512xi32>
    %c128_i32_9 = arith.constant 128 : i32
    %34 = vector.broadcast %c128_i32_9 : i32 to vector<1x512xi32>
    %35 = arith.cmpi slt, %33, %34 : vector<1x512xi32>
    %36 = arith.andi %31, %35 : vector<1x512xi1>
    %37 = arith.extui %36 : vector<1x512xi1> to vector<1x512xi32>
    %38 = arith.sitofp %37 : vector<1x512xi32> to vector<1x512xf32>
    %c0 = arith.constant 0 : index
    %c0_10 = arith.constant 0 : index
    %39 = vector.load %arg3[%c0, %c0_10] : memref<16x24xf32, #tpu.memory_space<vmem>>, vector<16x24xf32>
    %c0_11 = arith.constant 0 : index
    %c0_12 = arith.constant 0 : index
    %40 = vector.load %arg4[%c0_11, %c0_12] : memref<16x48xf32, #tpu.memory_space<vmem>>, vector<16x48xf32>
    %c0_13 = arith.constant 0 : index
    %c0_14 = arith.constant 0 : index
    %41 = vector.load %arg5[%c0_13, %c0_14] : memref<16x8xf32, #tpu.memory_space<vmem>>, vector<16x8xf32>
    %42 = vector.extract_strided_slice %41 {offsets = [0, 0], sizes = [16, 1], strides = [1, 1]} : vector<16x8xf32> to vector<16x1xf32>
    %43 = vector.extract_strided_slice %41 {offsets = [0, 1], sizes = [16, 1], strides = [1, 1]} : vector<16x8xf32> to vector<16x1xf32>
    %44 = vector.extract_strided_slice %41 {offsets = [0, 2], sizes = [16, 1], strides = [1, 1]} : vector<16x8xf32> to vector<16x1xf32>
    %45 = vector.extract_strided_slice %41 {offsets = [0, 3], sizes = [16, 1], strides = [1, 1]} : vector<16x8xf32> to vector<16x1xf32>
    %46 = vector.extract_strided_slice %41 {offsets = [0, 4], sizes = [16, 1], strides = [1, 1]} : vector<16x8xf32> to vector<16x1xf32>
    %47 = vector.extract_strided_slice %41 {offsets = [0, 5], sizes = [16, 1], strides = [1, 1]} : vector<16x8xf32> to vector<16x1xf32>
    %48 = vector.extract_strided_slice %41 {offsets = [0, 6], sizes = [16, 1], strides = [1, 1]} : vector<16x8xf32> to vector<16x1xf32>
    %49 = vector.extract_strided_slice %41 {offsets = [0, 7], sizes = [1, 1], strides = [1, 1]} : vector<16x8xf32> to vector<1x1xf32>
    %c0_15 = arith.constant 0 : index
    %c0_16 = arith.constant 0 : index
    %50 = vector.load %arg1[%c0_15, %c0_16] : memref<8x512xf32, #tpu.memory_space<vmem>>, vector<8x512xf32>
    %c0_17 = arith.constant 0 : index
    %c0_18 = arith.constant 0 : index
    %51 = vector.load %arg2[%c0_17, %c0_18] : memref<1x512xf32, #tpu.memory_space<vmem>>, vector<1x512xf32>
    %52 = vector.shape_cast %51 : vector<1x512xf32> to vector<1x512xf32>
    %53 = vector.broadcast %52 : vector<1x512xf32> to vector<16x512xf32>
    %54 = vector.broadcast %51 : vector<1x512xf32> to vector<8x512xf32>
    %55 = arith.mulf %50, %54 : vector<8x512xf32>
    %c1_i32_19 = arith.constant 1 : i32
    %56 = tpu.dynamic_rotate %55 by %c1_i32_19 dim 1 : vector<8x512xf32>, i32 -> vector<8x512xf32>
    %57 = vector.broadcast %27 : vector<1x512xf32> to vector<8x512xf32>
    %58 = arith.mulf %56, %57 : vector<8x512xf32>
    %c511_i32 = arith.constant 511 : i32
    %59 = tpu.dynamic_rotate %55 by %c511_i32 dim 1 : vector<8x512xf32>, i32 -> vector<8x512xf32>
    %60 = vector.broadcast %38 : vector<1x512xf32> to vector<8x512xf32>
    %61 = arith.mulf %59, %60 : vector<8x512xf32>
    %62 = tpu.concatenate %58, %55, %61 in 0 : vector<8x512xf32>, vector<8x512xf32>, vector<8x512xf32> -> vector<24x512xf32>
    %cst = arith.constant dense<0.000000e+00> : vector<16x512xf32>
    %63 = tpu.matmul %39, %62, %cst {dimension_numbers = #tpu.dot_dimension_numbers<[1], [0], [0], [1], [0, 0, 1, 1], [], []>} : vector<16x24xf32>, vector<24x512xf32>, vector<16x512xf32> -> vector<16x512xf32>
    %64 = vector.broadcast %42 : vector<16x1xf32> to vector<16x512xf32>
    %65 = arith.addf %63, %64 : vector<16x512xf32>
    %cst_20 = arith.constant 0.000000e+00 : f32
    %66 = vector.broadcast %cst_20 : f32 to vector<16x512xf32>
    %67 = arith.maximumf %65, %66 : vector<16x512xf32>
    %cst_21 = arith.constant dense<0.000000e+00> : vector<512xf32>
    %68 = vector.multi_reduction <add>, %67, %cst_21 [0] : vector<16x512xf32> to vector<512xf32>
    %69 = vector.shape_cast %68 : vector<512xf32> to vector<1x512xf32>
    %cst_22 = arith.constant 1.600000e+01 : f32
    %70 = vector.broadcast %cst_22 : f32 to vector<1x512xf32>
    %71 = arith.divf %69, %70 : vector<1x512xf32>
    %72 = vector.broadcast %71 : vector<1x512xf32> to vector<16x512xf32>
    %73 = arith.subf %67, %72 : vector<16x512xf32>
    %74 = arith.mulf %73, %73 : vector<16x512xf32>
    %cst_23 = arith.constant dense<0.000000e+00> : vector<512xf32>
    %75 = vector.multi_reduction <add>, %74, %cst_23 [0] : vector<16x512xf32> to vector<512xf32>
    %76 = vector.shape_cast %75 : vector<512xf32> to vector<1x512xf32>
    %cst_24 = arith.constant 1.600000e+01 : f32
    %77 = vector.broadcast %cst_24 : f32 to vector<1x512xf32>
    %78 = arith.divf %76, %77 : vector<1x512xf32>
    %cst_25 = arith.constant 9.99999974E-5 : f32
    %79 = vector.broadcast %cst_25 : f32 to vector<1x512xf32>
    %80 = arith.addf %78, %79 : vector<1x512xf32>
    %81 = math.rsqrt %80 : vector<1x512xf32>
    %82 = vector.broadcast %81 : vector<1x512xf32> to vector<16x512xf32>
    %83 = arith.mulf %73, %82 : vector<16x512xf32>
    %84 = vector.broadcast %43 : vector<16x1xf32> to vector<16x512xf32>
    %85 = arith.mulf %83, %84 : vector<16x512xf32>
    %86 = vector.broadcast %44 : vector<16x1xf32> to vector<16x512xf32>
    %87 = arith.addf %85, %86 : vector<16x512xf32>
    %88 = arith.mulf %87, %53 : vector<16x512xf32>
    %c1_i32_26 = arith.constant 1 : i32
    %89 = tpu.dynamic_rotate %88 by %c1_i32_26 dim 1 : vector<16x512xf32>, i32 -> vector<16x512xf32>
    %90 = vector.broadcast %27 : vector<1x512xf32> to vector<16x512xf32>
    %91 = arith.mulf %89, %90 : vector<16x512xf32>
    %c511_i32_27 = arith.constant 511 : i32
    %92 = tpu.dynamic_rotate %88 by %c511_i32_27 dim 1 : vector<16x512xf32>, i32 -> vector<16x512xf32>
    %93 = vector.broadcast %38 : vector<1x512xf32> to vector<16x512xf32>
    %94 = arith.mulf %92, %93 : vector<16x512xf32>
    %95 = tpu.concatenate %91, %88, %94 in 0 : vector<16x512xf32>, vector<16x512xf32>, vector<16x512xf32> -> vector<48x512xf32>
    %cst_28 = arith.constant dense<0.000000e+00> : vector<16x512xf32>
    %96 = tpu.matmul %40, %95, %cst_28 {dimension_numbers = #tpu.dot_dimension_numbers<[1], [0], [0], [1], [0, 0, 1, 1], [], []>} : vector<16x48xf32>, vector<48x512xf32>, vector<16x512xf32> -> vector<16x512xf32>
    %97 = vector.broadcast %45 : vector<16x1xf32> to vector<16x512xf32>
    %98 = arith.addf %96, %97 : vector<16x512xf32>
    %cst_29 = arith.constant 0.000000e+00 : f32
    %99 = vector.broadcast %cst_29 : f32 to vector<16x512xf32>
    %100 = arith.maximumf %98, %99 : vector<16x512xf32>
    %cst_30 = arith.constant dense<0.000000e+00> : vector<512xf32>
    %101 = vector.multi_reduction <add>, %100, %cst_30 [0] : vector<16x512xf32> to vector<512xf32>
    %102 = vector.shape_cast %101 : vector<512xf32> to vector<1x512xf32>
    %cst_31 = arith.constant 1.600000e+01 : f32
    %103 = vector.broadcast %cst_31 : f32 to vector<1x512xf32>
    %104 = arith.divf %102, %103 : vector<1x512xf32>
    %105 = vector.broadcast %104 : vector<1x512xf32> to vector<16x512xf32>
    %106 = arith.subf %100, %105 : vector<16x512xf32>
    %107 = arith.mulf %106, %106 : vector<16x512xf32>
    %cst_32 = arith.constant dense<0.000000e+00> : vector<512xf32>
    %108 = vector.multi_reduction <add>, %107, %cst_32 [0] : vector<16x512xf32> to vector<512xf32>
    %109 = vector.shape_cast %108 : vector<512xf32> to vector<1x512xf32>
    %cst_33 = arith.constant 1.600000e+01 : f32
    %110 = vector.broadcast %cst_33 : f32 to vector<1x512xf32>
    %111 = arith.divf %109, %110 : vector<1x512xf32>
    %cst_34 = arith.constant 9.99999974E-5 : f32
    %112 = vector.broadcast %cst_34 : f32 to vector<1x512xf32>
    %113 = arith.addf %111, %112 : vector<1x512xf32>
    %114 = math.rsqrt %113 : vector<1x512xf32>
    %115 = vector.broadcast %114 : vector<1x512xf32> to vector<16x512xf32>
    %116 = arith.mulf %106, %115 : vector<16x512xf32>
    %117 = vector.broadcast %46 : vector<16x1xf32> to vector<16x512xf32>
    %118 = arith.mulf %116, %117 : vector<16x512xf32>
    %119 = vector.broadcast %47 : vector<16x1xf32> to vector<16x512xf32>
    %120 = arith.addf %118, %119 : vector<16x512xf32>
    %121 = arith.mulf %120, %53 : vector<16x512xf32>
    %122 = vector.broadcast %48 : vector<16x1xf32> to vector<16x512xf32>
    %123 = arith.mulf %121, %122 : vector<16x512xf32>
    %cst_35 = arith.constant dense<0.000000e+00> : vector<512xf32>
    %124 = vector.multi_reduction <add>, %123, %cst_35 [0] : vector<16x512xf32> to vector<512xf32>
    %125 = vector.shape_cast %124 : vector<512xf32> to vector<1x512xf32>
    %126 = vector.broadcast %49 : vector<1x1xf32> to vector<1x512xf32>
    %127 = arith.addf %125, %126 : vector<1x512xf32>
    %128 = arith.mulf %127, %51 : vector<1x512xf32>
    %c0_36 = arith.constant 0 : index
    %c0_37 = arith.constant 0 : index
    %129 = vector.load %arg6[%c0_36, %c0_37] : memref<1x512xf32, #tpu.memory_space<vmem>>, vector<1x512xf32>
    tpu.vector_store %arg6[%c0_36, %c0_37], %128 {strides = array<i32>} : memref<1x512xf32, #tpu.memory_space<vmem>>, vector<1x512xf32>,
    return
  }
  func.func @transform_0(%arg0: i32) -> (i32, i32) {
    %c0_i32 = arith.constant 0 : i32
    %c0_i32_0 = arith.constant 0 : i32
    return %c0_i32, %arg0 : i32, i32
  }
  func.func @transform_1(%arg0: i32) -> (i32, i32) {
    %c0_i32 = arith.constant 0 : i32
    %c0_i32_0 = arith.constant 0 : i32
    return %c0_i32, %arg0 : i32, i32
  }
  func.func @transform_2(%arg0: i32) -> (i32, i32) {
    %c0_i32 = arith.constant 0 : i32
    %c0_i32_0 = arith.constant 0 : i32
    %c0_i32_1 = arith.constant 0 : i32
    return %c0_i32, %c0_i32_0 : i32, i32
  }
  func.func @transform_3(%arg0: i32) -> (i32, i32) {
    %c0_i32 = arith.constant 0 : i32
    %c0_i32_0 = arith.constant 0 : i32
    %c0_i32_1 = arith.constant 0 : i32
    return %c0_i32, %c0_i32_0 : i32, i32
  }
  func.func @transform_4(%arg0: i32) -> (i32, i32) {
    %c0_i32 = arith.constant 0 : i32
    %c0_i32_0 = arith.constant 0 : i32
    %c0_i32_1 = arith.constant 0 : i32
    return %c0_i32, %c0_i32_0 : i32, i32
  }
  func.func @transform_5(%arg0: i32) -> (i32, i32) {
    %c0_i32 = arith.constant 0 : i32
    %c0_i32_0 = arith.constant 0 : i32
    return %c0_i32, %arg0 : i32, i32
  }
}

</mosaic_0001>

<llo_original>
// kernel: tpu_custom_call.1
$region0: #{tpu_custom_call.1}
  #allocation0 [shape = 'u32[]', space=smem, size = 0x4, offset = 0x4, fixed_abs, tag = 'smem constant byte address 0x4 - core index']
  #allocation1 [shape = 'u32[72,128]{1,0:T(1,128)}', space=vmem, size = 0x9000, scoped, tag = 'internal scratch']
  %s0 = inlined_call_operand.hbm [shape: f32[8,512], index: 0, kind: input, shape index: {}]
  %s1 = inlined_call_operand.vmem [shape: f32[1,512], index: 1, kind: input, shape index: {}]
  %s2 = inlined_call_operand.vmem [shape: f32[16,24], index: 2, kind: input, shape index: {}]
  %s3 = inlined_call_operand.hbm [shape: f32[16,48], index: 3, kind: input, shape index: {}]
  %s4 = inlined_call_operand.vmem [shape: f32[16,8], index: 4, kind: input, shape index: {}]
  %s5 = inlined_call_operand.hbm [shape: f32[1,512], index: 5, kind: output, shape index: {}]
  %s6 = sld [smem:[#allocation0]]
  $region38: #{tpu_custom_call.1} parent=0
    _
  %s8 = ssub.s32 1, %s6
  %s9 = scalar_select 0, %s8, %s6
  $region1: #{tpu_custom_call.1} parent=0
    #allocation2 [shape = 'u8[16384]{0}', space=vmem, size = 0x4000, scoped, tag = 'input window, operand 0, single buffered']
    #allocation3 [shape = 's32[1]{0}', space=sflag, size = 0x4, scoped, tag = 'scoped memory for tpu_custom_call.1']
    #allocation4 [shape = 's32[1]{0}', space=sflag, size = 0x4, scoped, tag = 'scoped memory for tpu_custom_call.1']
    #allocation5 [shape = 'u8[8192]{0}', space=vmem, size = 0x2000, scoped, tag = 'input window, operand 3, single buffered']
    #allocation6 [shape = 's32[1]{0}', space=sflag, size = 0x4, scoped, tag = 'scoped memory for tpu_custom_call.1']
    #allocation7 [shape = 'u8[2048]{0}', space=vmem, size = 0x800, scoped, tag = 'output window, operand 0, single buffered']
    %10 = vsyncpa [#allocation3], 0
    %11 = vsyncpa [#allocation6], 0
    %12 = vsyncpa [#allocation4], 0
    // Predicated region
    $region2: #{tpu_custom_call.1} parent=1 // pred_check
      _
    $region3: #{tpu_custom_call.1} parent=1 // pred_check_branch
      %14 = sbr.rel (0) target = $region5
    $region4: #{tpu_custom_call.1} parent=1 // pred_region
      %16 = vsyncadd [#allocation3], 0
      %s18 = sshll.u32 %s0, 4
      %s19 = int_to_ptr.hbm [resolvable:$true] %s18
      %s20 = sshll.u32 [#allocation2], 4
      %s21 = int_to_ptr.vmem [resolvable:$true] %s20
      %23 = dma.hbm_to_vmem [thread:$0]  %s19, 512, %s21, [#allocation3]
    $region5: #{tpu_custom_call.1} parent=1 // pred_fallthru
      _
    // Predicated region
    $region6: #{tpu_custom_call.1} parent=1 // pred_check
      _
    $region7: #{tpu_custom_call.1} parent=1 // pred_check_branch
      %25 = sbr.rel (0) target = $region9
    $region8: #{tpu_custom_call.1} parent=1 // pred_region
      _
    $region9: #{tpu_custom_call.1} parent=1 // pred_fallthru
      _
    // Predicated region
    $region10: #{tpu_custom_call.1} parent=1 // pred_check
      _
    $region11: #{tpu_custom_call.1} parent=1 // pred_check_branch
      %27 = sbr.rel (0) target = $region13
    $region12: #{tpu_custom_call.1} parent=1 // pred_region
      _
    $region13: #{tpu_custom_call.1} parent=1 // pred_fallthru
      _
    // Predicated region
    $region14: #{tpu_custom_call.1} parent=1 // pred_check
      _
    $region15: #{tpu_custom_call.1} parent=1 // pred_check_branch
      %29 = sbr.rel (0) target = $region17
    $region16: #{tpu_custom_call.1} parent=1 // pred_region
      %31 = vsyncadd [#allocation6], 0
      %s32 = sshll.u32 %s3, 4
      %s33 = int_to_ptr.hbm [resolvable:$true] %s32
      %s34 = sshll.u32 [#allocation5], 4
      %s35 = int_to_ptr.vmem [resolvable:$true] %s34
      %40 = dma.hbm_to_vmem [thread:$0]  %s33, 256, %s35, [#allocation6], 128, 128, 8
    $region17: #{tpu_custom_call.1} parent=1 // pred_fallthru
      _
    // Predicated region
    $region18: #{tpu_custom_call.1} parent=1 // pred_check
      _
    $region19: #{tpu_custom_call.1} parent=1 // pred_check_branch
      %42 = sbr.rel (0) target = $region21
    $region20: #{tpu_custom_call.1} parent=1 // pred_region
      _
    $region21: #{tpu_custom_call.1} parent=1 // pred_fallthru
      _
    // Predicated region
    $region22: #{tpu_custom_call.1} parent=1 // pred_check
      _
    $region23: #{tpu_custom_call.1} parent=1 // pred_check_branch
      %44 = sbr.rel (0) target = $region25
    $region24: #{tpu_custom_call.1} parent=1 // pred_region
      %46 = dma.done [#allocation3], 512
    $region25: #{tpu_custom_call.1} parent=1 // pred_fallthru
      _
    // Predicated region
    $region26: #{tpu_custom_call.1} parent=1 // pred_check
      _
    $region27: #{tpu_custom_call.1} parent=1 // pred_check_branch
      %48 = sbr.rel (0) target = $region29
    $region28: #{tpu_custom_call.1} parent=1 // pred_region
      %50 = dma.done [#allocation6], 256
    $region29: #{tpu_custom_call.1} parent=1 // pred_fallthru
      _
    %v51 = vlaneseq
    %v52 = vand.u32 %v51, 127
    %v53 = vadd.s32 %v52, 128
    %v54 = vadd.s32 %v52, 256
    %v55 = vadd.s32 %v52, 384
    %vm56 = vcmp.lt.s32.totalorder %v52, 0
    %v57 = vsub.s32 0, %v52
    %v58 = vsel %vm56, %v57, %v52
    %v59 = vshrl.u32 %v58, 7
    %v60 = vand.u32 %v58, 127
    %v61 = vsub.s32 0, %v60
    %v62 = vsel %vm56, %v61, %v60
    %vm63 = vcmp.lt.s32.totalorder %v53, 0
    %v64 = vsub.s32 0, %v53
    %v65 = vsel %vm63, %v64, %v53
    %v66 = vshrl.u32 %v65, 7
    %v67 = vand.u32 %v65, 127
    %v68 = vsub.s32 0, %v67
    %v69 = vsel %vm63, %v68, %v67
    %vm70 = vcmp.lt.s32.totalorder %v54, 0
    %v71 = vsub.s32 0, %v54
    %v72 = vsel %vm70, %v71, %v54
    %v73 = vshrl.u32 %v72, 7
    %v74 = vand.u32 %v72, 127
    %v75 = vsub.s32 0, %v74
    %v76 = vsel %vm70, %v75, %v74
    %vm77 = vcmp.lt.s32.totalorder %v55, 0
    %v78 = vsub.s32 0, %v55
    %v79 = vsel %vm77, %v78, %v55
    %v80 = vshrl.u32 %v79, 7
    %v81 = vand.u32 %v79, 127
    %v82 = vsub.s32 0, %v81
    %v83 = vsel %vm77, %v82, %v81
    %vm84 = vcmp.ne.s32.totalorder %v62, 0
    %vm85 = vcmp.ne.s32.totalorder %v69, 0
    %vm86 = vcmp.ne.s32.totalorder %v76, 0
    %vm87 = vcmp.ne.s32.totalorder %v83, 0
    %vm88 = vcmp.lt.s32.totalorder %v62, 0
    %vm89 = vcmp.lt.s32.totalorder %v69, 0
    %vm90 = vcmp.lt.s32.totalorder %v76, 0
    %vm91 = vcmp.lt.s32.totalorder %v83, 0
    %vm92 = vmand %vm88, %vm84
    %vm93 = vmand %vm89, %vm85
    %vm94 = vmand %vm90, %vm86
    %vm95 = vmand %vm91, %vm87
    %v96 = vadd.s32 %v62, 128
    %v97 = vadd.s32 %v69, 128
    %v98 = vadd.s32 %v76, 128
    %v99 = vadd.s32 %v83, 128
    %v100 = vsel %vm92, %v96, %v62
    %v101 = vsel %vm93, %v97, %v69
    %v102 = vsel %vm94, %v98, %v76
    %v103 = vsel %vm95, %v99, %v83
    %v104 = vadd.s32 %v100, 4294967295
    %v105 = vadd.s32 %v101, 4294967295
    %v106 = vadd.s32 %v102, 4294967295
    %v107 = vadd.s32 %v103, 4294967295
    %vm108 = vcmp.ge.s32.totalorder %v104, 0
    %vm109 = vcmp.ge.s32.totalorder %v105, 0
    %vm110 = vcmp.ge.s32.totalorder %v106, 0
    %vm111 = vcmp.ge.s32.totalorder %v107, 0
    %vm112 = vcmp.lt.s32.totalorder %v104, 128
    %vm113 = vcmp.lt.s32.totalorder %v105, 128
    %vm114 = vcmp.lt.s32.totalorder %v106, 128
    %vm115 = vcmp.lt.s32.totalorder %v107, 128
    %vm116 = vmand %vm108, %vm112
    %vm117 = vmand %vm109, %vm113
    %vm118 = vmand %vm110, %vm114
    %vm119 = vmand %vm111, %vm115
    %v120 = vsel %vm116, 1, 0
    %v121 = vsel %vm117, 1, 0
    %v122 = vsel %vm118, 1, 0
    %v123 = vsel %vm119, 1, 0
    %v124 = vcvt.s32.f32 %v120
    %v125 = vcvt.s32.f32 %v121
    %v126 = vcvt.s32.f32 %v122
    %v127 = vcvt.s32.f32 %v123
    %v128 = vadd.s32 %v100, 1
    %v129 = vadd.s32 %v101, 1
    %v130 = vadd.s32 %v102, 1
    %v131 = vadd.s32 %v103, 1
    %vm132 = vcmp.ge.s32.totalorder %v128, 0
    %vm133 = vcmp.ge.s32.totalorder %v129, 0
    %vm134 = vcmp.ge.s32.totalorder %v130, 0
    %vm135 = vcmp.ge.s32.totalorder %v131, 0
    %vm136 = vcmp.lt.s32.totalorder %v128, 128
    %vm137 = vcmp.lt.s32.totalorder %v129, 128
    %vm138 = vcmp.lt.s32.totalorder %v130, 128
    %vm139 = vcmp.lt.s32.totalorder %v131, 128
    %vm140 = vmand %vm132, %vm136
    %vm141 = vmand %vm133, %vm137
    %vm142 = vmand %vm134, %vm138
    %vm143 = vmand %vm135, %vm139
    %v144 = vsel %vm140, 1, 0
    %v145 = vsel %vm141, 1, 0
    %v146 = vsel %vm142, 1, 0
    %v147 = vsel %vm143, 1, 0
    %v148 = vcvt.s32.f32 %v144
    %v149 = vcvt.s32.f32 %v145
    %v150 = vcvt.s32.f32 %v146
    %v151 = vcvt.s32.f32 %v147
    %v152 = vld [vmem:[%s2] sm:$0xff]
    %v153 = vld [vmem:[%s2 + $0x8] sm:$0xff]
    %v154 = vld [vmem:[#allocation5] sm:$0xff]
    %v155 = vld [vmem:[#allocation5 + $0x8] sm:$0xff]
    %v156 = vld [vmem:[%s4] sm:$0xff]
    %v157 = vld [vmem:[%s4 + $0x8] sm:$0xff]
    %v158 = vld [vmem:[#allocation2] sm:$0xff]
    %v159 = vld [vmem:[#allocation2 + $0x8] sm:$0xff]
    %v160 = vld [vmem:[#allocation2 + $0x10] sm:$0xff]
    %v161 = vld [vmem:[#allocation2 + $0x18] sm:$0xff]
    %v162 = vld [vmem:[%s1] sm:$0xf]
    %v164 = vperm.slane %v162, 0
    %v165 = vperm.slane %v162, 1
    %v166 = vperm.slane %v162, 2
    %v167 = vperm.slane %v162, 3
    %v172 = vmul.f32 %v158, %v164
    %v173 = vmul.f32 %v159, %v165
    %v174 = vmul.f32 %v160, %v166
    %v175 = vmul.f32 %v161, %v167
    %176 = vrot.lane.b32.xlu0 %v172, 1
    %v177 = vpop.permute.xlu0 %176
    %178 = vrot.lane.b32.xlu0 %v173, 1
    %v179 = vpop.permute.xlu0 %178
    %180 = vrot.lane.b32.xlu0 %v174, 1
    %v181 = vpop.permute.xlu0 %180
    %182 = vrot.lane.b32.xlu0 %v175, 1
    %v183 = vpop.permute.xlu0 %182
    %vm184 = vcmp.lt.s32.totalorder %v52, 1
    %v185 = vsel %vm184, %v181, %v183
    %v186 = vsel %vm184, %v179, %v181
    %v187 = vsel %vm184, %v177, %v179
    %v188 = vsel %vm184, %v183, %v177
    %v189 = vmul.f32 %v188, %v124
    %v190 = vmul.f32 %v187, %v125
    %v191 = vmul.f32 %v186, %v126
    %v192 = vmul.f32 %v185, %v127
    %193 = vrot.lane.b32.xlu0 %v172, 127
    %v194 = vpop.permute.xlu0 %193
    %195 = vrot.lane.b32.xlu0 %v173, 127
    %v196 = vpop.permute.xlu0 %195
    %197 = vrot.lane.b32.xlu0 %v174, 127
    %v198 = vpop.permute.xlu0 %197
    %199 = vrot.lane.b32.xlu0 %v175, 127
    %v200 = vpop.permute.xlu0 %199
    %vm201 = vcmp.lt.s32.totalorder %v52, 127
    %v202 = vsel %vm201, %v198, %v200
    %v203 = vsel %vm201, %v196, %v198
    %v204 = vsel %vm201, %v194, %v196
    %v205 = vsel %vm201, %v200, %v194
    %v206 = vmul.f32 %v204, %v148
    %v207 = vmul.f32 %v203, %v149
    %v208 = vmul.f32 %v202, %v150
    %v209 = vmul.f32 %v205, %v151
    %211 = vset.pattern.permute.xlu0 0
    %212 = vperm.xlu0 %211, %v156
    %v213 = vpop.permute.xlu0 %212
    %216 = vset.pattern.permute.xlu0 0
    %217 = vperm.xlu0 %216, %v157
    %v218 = vpop.permute.xlu0 %217
    %vm220 = vcmask 195584
    %v222 = vsel %vm220, %v152, 0
    %v225 = vsel %vm220, %v153, 0
    %227 = vmatpush.msra.mxu0 0.0
    %228 = vmatpush.msra.mxu0 0.0
    %229 = vmatpush.msra.mxu0 0.0
    %230 = vmatpush.msra.mxu0 0.0
    %231 = vmatpush.msra.mxu0 0.0
    %232 = vmatpush.msra.mxu0 0.0
    %233 = vmatpush.msra.mxu0 0.0
    %234 = vmatpush.msra.mxu0 0.0
    %235 = vmatpush.msra.mxu0 0.0
    %236 = vmatpush.msra.mxu0 0.0
    %237 = vmatpush.msra.mxu0 0.0
    %238 = vmatpush.msra.mxu0 0.0
    %239 = vmatpush.msra.mxu0 0.0
    %240 = vmatpush.msra.mxu0 %v206
    %241 = vmatpush.msra.mxu0 %v172
    %242 = vmatpush.msra.mxu0 %v189
    %243 = vmatmul.f32.gmra.mxu0 %v222
    %v244 = vpop.f32.mrf.mxu0
    %v245 = vadd.f32 %v213, %v244
    %246 = vmatmul.f32.gmra.mxu0 %v225
    %v247 = vpop.f32.mrf.mxu0
    %v248 = vadd.f32 %v218, %v247
    %249 = vdwg.mxu0
    %250 = vmatpush.msra.mxu0 0.0
    %251 = vmatpush.msra.mxu0 0.0
    %252 = vmatpush.msra.mxu0 0.0
    %253 = vmatpush.msra.mxu0 0.0
    %254 = vmatpush.msra.mxu0 0.0
    %255 = vmatpush.msra.mxu0 0.0
    %256 = vmatpush.msra.mxu0 0.0
    %257 = vmatpush.msra.mxu0 0.0
    %258 = vmatpush.msra.mxu0 0.0
    %259 = vmatpush.msra.mxu0 0.0
    %260 = vmatpush.msra.mxu0 0.0
    %261 = vmatpush.msra.mxu0 0.0
    %262 = vmatpush.msra.mxu0 0.0
    %263 = vmatpush.msra.mxu0 %v207
    %264 = vmatpush.msra.mxu0 %v173
    %265 = vmatpush.msra.mxu0 %v190
    %266 = vmatmul.f32.gmra.mxu0 %v222
    %v267 = vpop.f32.mrf.mxu0
    %v268 = vadd.f32 %v213, %v267
    %269 = vmatmul.f32.gmra.mxu0 %v225
    %v270 = vpop.f32.mrf.mxu0
    %v271 = vadd.f32 %v218, %v270
    %272 = vdwg.mxu0
    %273 = vmatpush.msra.mxu0 0.0
    %274 = vmatpush.msra.mxu0 0.0
    %275 = vmatpush.msra.mxu0 0.0
    %276 = vmatpush.msra.mxu0 0.0
    %277 = vmatpush.msra.mxu0 0.0
    %278 = vmatpush.msra.mxu0 0.0
    %279 = vmatpush.msra.mxu0 0.0
    %280 = vmatpush.msra.mxu0 0.0
    %281 = vmatpush.msra.mxu0 0.0
    %282 = vmatpush.msra.mxu0 0.0
    %283 = vmatpush.msra.mxu0 0.0
    %284 = vmatpush.msra.mxu0 0.0
    %285 = vmatpush.msra.mxu0 0.0
    %286 = vmatpush.msra.mxu0 %v208
    %287 = vmatpush.msra.mxu0 %v174
    %288 = vmatpush.msra.mxu0 %v191
    %289 = vmatmul.f32.gmra.mxu0 %v222
    %v290 = vpop.f32.mrf.mxu0
    %v291 = vadd.f32 %v213, %v290
    %292 = vmatmul.f32.gmra.mxu0 %v225
    %v293 = vpop.f32.mrf.mxu0
    %v294 = vadd.f32 %v218, %v293
    %295 = vdwg.mxu0
    %296 = vmatpush.msra.mxu0 0.0
    %297 = vmatpush.msra.mxu0 0.0
    %298 = vmatpush.msra.mxu0 0.0
    %299 = vmatpush.msra.mxu0 0.0
    %300 = vmatpush.msra.mxu0 0.0
    %301 = vmatpush.msra.mxu0 0.0
    %302 = vmatpush.msra.mxu0 0.0
    %303 = vmatpush.msra.mxu0 0.0
    %304 = vmatpush.msra.mxu0 0.0
    %305 = vmatpush.msra.mxu0 0.0
    %306 = vmatpush.msra.mxu0 0.0
    %307 = vmatpush.msra.mxu0 0.0
    %308 = vmatpush.msra.mxu0 0.0
    %309 = vmatpush.msra.mxu0 %v209
    %310 = vmatpush.msra.mxu0 %v175
    %311 = vmatpush.msra.mxu0 %v192
    %312 = vmatmul.f32.gmra.mxu0 %v222
    %v313 = vpop.f32.mrf.mxu0
    %v314 = vadd.f32 %v213, %v313
    %315 = vmatmul.f32.gmra.mxu0 %v225
    %v316 = vpop.f32.mrf.mxu0
    %v317 = vadd.f32 %v218, %v316
    %318 = vdwg.mxu0
    %v319 = vmax.f32 %v245, 0.0
    %v320 = vmax.f32 %v268, 0.0
    %v321 = vmax.f32 %v291, 0.0
    %v322 = vmax.f32 %v314, 0.0
    %v323 = vmax.f32 %v248, 0.0
    %v324 = vmax.f32 %v271, 0.0
    %v325 = vmax.f32 %v294, 0.0
    %v326 = vmax.f32 %v317, 0.0
    %v327 = vadd.f32 %v319, %v323
    %v328 = vrot.slane %v327, 4
    %v329 = vadd.f32 %v327, %v328
    %v330 = vrot.slane %v329, 2
    %v331 = vadd.f32 %v329, %v330
    %v332 = vrot.slane %v331, 1
    %v333 = vadd.f32 %v331, %v332
    %v334 = vadd.f32 %v320, %v324
    %v335 = vrot.slane %v334, 4
    %v336 = vadd.f32 %v334, %v335
    %v337 = vrot.slane %v336, 2
    %v338 = vadd.f32 %v336, %v337
    %v339 = vrot.slane %v338, 1
    %v340 = vadd.f32 %v338, %v339
    %v341 = vadd.f32 %v321, %v325
    %v342 = vrot.slane %v341, 4
    %v343 = vadd.f32 %v341, %v342
    %v344 = vrot.slane %v343, 2
    %v345 = vadd.f32 %v343, %v344
    %v346 = vrot.slane %v345, 1
    %v347 = vadd.f32 %v345, %v346
    %v348 = vadd.f32 %v322, %v326
    %v349 = vrot.slane %v348, 4
    %v350 = vadd.f32 %v348, %v349
    %v351 = vrot.slane %v350, 2
    %v352 = vadd.f32 %v350, %v351
    %v353 = vrot.slane %v352, 1
    %v354 = vadd.f32 %v352, %v353
    %v355 = vrcp.pop 16.0
    %v356 = vmul.f32 16.0, %v355
    %v357 = vsub.f32 1.0, %v356
    %v358 = vmul.f32 %v355, %v357
    %v359 = vadd.f32 %v355, %v358
    %vm360 = vweird.f32 %v355
    %v361 = vsel %vm360, %v355, %v359
    %v362 = vmul.f32 %v333, %v361
    %v363 = vmul.f32 %v340, %v361
    %v364 = vmul.f32 %v347, %v361
    %v365 = vmul.f32 %v354, %v361
    %v366 = vsub.f32 %v319, %v362
    %v367 = vsub.f32 %v320, %v363
    %v368 = vsub.f32 %v321, %v364
    %v369 = vsub.f32 %v322, %v365
    %v370 = vsub.f32 %v323, %v362
    %v371 = vsub.f32 %v324, %v363
    %v372 = vsub.f32 %v325, %v364
    %v373 = vsub.f32 %v326, %v365
    %v374 = vmul.f32 %v366, %v366
    %v375 = vmul.f32 %v367, %v367
    %v376 = vmul.f32 %v368, %v368
    %v377 = vmul.f32 %v369, %v369
    %v378 = vmul.f32 %v370, %v370
    %v379 = vmul.f32 %v371, %v371
    %v380 = vmul.f32 %v372, %v372
    %v381 = vmul.f32 %v373, %v373
    %v382 = vadd.f32 %v374, %v378
    %v383 = vrot.slane %v382, 4
    %v384 = vadd.f32 %v382, %v383
    %v385 = vrot.slane %v384, 2
    %v386 = vadd.f32 %v384, %v385
    %v387 = vrot.slane %v386, 1
    %v388 = vadd.f32 %v386, %v387
    %v389 = vadd.f32 %v375, %v379
    %v390 = vrot.slane %v389, 4
    %v391 = vadd.f32 %v389, %v390
    %v392 = vrot.slane %v391, 2
    %v393 = vadd.f32 %v391, %v392
    %v394 = vrot.slane %v393, 1
    %v395 = vadd.f32 %v393, %v394
    %v396 = vadd.f32 %v376, %v380
    %v397 = vrot.slane %v396, 4
    %v398 = vadd.f32 %v396, %v397
    %v399 = vrot.slane %v398, 2
    %v400 = vadd.f32 %v398, %v399
    %v401 = vrot.slane %v400, 1
    %v402 = vadd.f32 %v400, %v401
    %v403 = vadd.f32 %v377, %v381
    %v404 = vrot.slane %v403, 4
    %v405 = vadd.f32 %v403, %v404
    %v406 = vrot.slane %v405, 2
    %v407 = vadd.f32 %v405, %v406
    %v408 = vrot.slane %v407, 1
    %v409 = vadd.f32 %v407, %v408
    %v410 = vmul.f32 %v388, %v361
    %v411 = vmul.f32 %v395, %v361
    %v412 = vmul.f32 %v402, %v361
    %v413 = vmul.f32 %v409, %v361
    %v414 = vadd.f32 %v410, 0.0001
    %v415 = vadd.f32 %v411, 0.0001
    %v416 = vadd.f32 %v412, 0.0001
    %v417 = vadd.f32 %v413, 0.0001
    %v418 = vrsqrt.pop %v414
    %v419 = vmul.f32 %v418, %v414
    %v420 = vmul.f32 %v419, %v418
    %v421 = vmul.f32 0.5, %v420
    %v422 = vsub.f32 1.5, %v421
    %v423 = vmul.f32 %v418, %v422
    %vm424 = vweird.f32 %v414
    %vm425 = vweird.f32 %v418
    %vm426 = vmor %vm424, %vm425
    %v427 = vsel %vm426, %v418, %v423
    %v428 = vrsqrt.pop %v415
    %v429 = vmul.f32 %v428, %v415
    %v430 = vmul.f32 %v429, %v428
    %v431 = vmul.f32 0.5, %v430
    %v432 = vsub.f32 1.5, %v431
    %v433 = vmul.f32 %v428, %v432
    %vm434 = vweird.f32 %v415
    %vm435 = vweird.f32 %v428
    %vm436 = vmor %vm434, %vm435
    %v437 = vsel %vm436, %v428, %v433
    %v438 = vrsqrt.pop %v416
    %v439 = vmul.f32 %v438, %v416
    %v440 = vmul.f32 %v439, %v438
    %v441 = vmul.f32 0.5, %v440
    %v442 = vsub.f32 1.5, %v441
    %v443 = vmul.f32 %v438, %v442
    %vm444 = vweird.f32 %v416
    %vm445 = vweird.f32 %v438
    %vm446 = vmor %vm444, %vm445
    %v447 = vsel %vm446, %v438, %v443
    %v448 = vrsqrt.pop %v417
    %v449 = vmul.f32 %v448, %v417
    %v450 = vmul.f32 %v449, %v448
    %v451 = vmul.f32 0.5, %v450
    %v452 = vsub.f32 1.5, %v451
    %v453 = vmul.f32 %v448, %v452
    %vm454 = vweird.f32 %v417
    %vm455 = vweird.f32 %v448
    %vm456 = vmor %vm454, %vm455
    %v457 = vsel %vm456, %v448, %v453
    %v458 = vmul.f32 %v366, %v427
    %v459 = vmul.f32 %v367, %v437
    %v460 = vmul.f32 %v368, %v447
    %v461 = vmul.f32 %v369, %v457
    %v462 = vmul.f32 %v370, %v427
    %v463 = vmul.f32 %v371, %v437
    %v464 = vmul.f32 %v372, %v447
    %v465 = vmul.f32 %v373, %v457
    %466 = vset.pattern.permute.xlu0 1
    %467 = vperm.xlu0 %466, %v156
    %v468 = vpop.permute.xlu0 %467
    %470 = vset.pattern.permute.xlu0 1
    %471 = vperm.xlu0 %470, %v157
    %v472 = vpop.permute.xlu0 %471
    %v474 = vmul.f32 %v458, %v468
    %v475 = vmul.f32 %v459, %v468
    %v476 = vmul.f32 %v460, %v468
    %v477 = vmul.f32 %v461, %v468
    %v478 = vmul.f32 %v462, %v472
    %v479 = vmul.f32 %v463, %v472
    %v480 = vmul.f32 %v464, %v472
    %v481 = vmul.f32 %v465, %v472
    %482 = vset.pattern.permute.xlu0 2
    %483 = vperm.xlu0 %482, %v156
    %v484 = vpop.permute.xlu0 %483
    %486 = vset.pattern.permute.xlu0 2
    %487 = vperm.xlu0 %486, %v157
    %v488 = vpop.permute.xlu0 %487
    %v490 = vadd.f32 %v474, %v484
    %v491 = vadd.f32 %v475, %v484
    %v492 = vadd.f32 %v476, %v484
    %v493 = vadd.f32 %v477, %v484
    %v494 = vadd.f32 %v478, %v488
    %v495 = vadd.f32 %v479, %v488
    %v496 = vadd.f32 %v480, %v488
    %v497 = vadd.f32 %v481, %v488
    %v498 = vmul.f32 %v490, %v164
    %v499 = vmul.f32 %v491, %v165
    %v500 = vmul.f32 %v492, %v166
    %v501 = vmul.f32 %v493, %v167
    %v502 = vmul.f32 %v494, %v164
    %v503 = vmul.f32 %v495, %v165
    %v504 = vmul.f32 %v496, %v166
    %v505 = vmul.f32 %v497, %v167
    %506 = vrot.lane.b32.xlu0 %v498, 1
    %v507 = vpop.permute.xlu0 %506
    %508 = vrot.lane.b32.xlu0 %v502, 1
    %v509 = vpop.permute.xlu0 %508
    %510 = vrot.lane.b32.xlu0 %v499, 1
    %v511 = vpop.permute.xlu0 %510
    %512 = vrot.lane.b32.xlu0 %v503, 1
    %v513 = vpop.permute.xlu0 %512
    %514 = vrot.lane.b32.xlu0 %v500, 1
    %v515 = vpop.permute.xlu0 %514
    %516 = vrot.lane.b32.xlu0 %v504, 1
    %v517 = vpop.permute.xlu0 %516
    %518 = vrot.lane.b32.xlu0 %v501, 1
    %v519 = vpop.permute.xlu0 %518
    %520 = vrot.lane.b32.xlu0 %v505, 1
    %v521 = vpop.permute.xlu0 %520
    %v522 = vsel %vm184, %v515, %v519
    %v523 = vsel %vm184, %v517, %v521
    %v524 = vsel %vm184, %v511, %v515
    %v525 = vsel %vm184, %v513, %v517
    %v526 = vsel %vm184, %v507, %v511
    %v527 = vsel %vm184, %v509, %v513
    %v528 = vsel %vm184, %v519, %v507
    %v529 = vsel %vm184, %v521, %v509
    %v530 = vmul.f32 %v528, %v124
    %v531 = vmul.f32 %v526, %v125
    %v532 = vmul.f32 %v524, %v126
    %v533 = vmul.f32 %v522, %v127
    %v534 = vmul.f32 %v529, %v124
    %v535 = vmul.f32 %v527, %v125
    %v536 = vmul.f32 %v525, %v126
    %v537 = vmul.f32 %v523, %v127
    %538 = vrot.lane.b32.xlu0 %v498, 127
    %v539 = vpop.permute.xlu0 %538
    %540 = vrot.lane.b32.xlu0 %v502, 127
    %v541 = vpop.permute.xlu0 %540
    %542 = vrot.lane.b32.xlu0 %v499, 127
    %v543 = vpop.permute.xlu0 %542
    %544 = vrot.lane.b32.xlu0 %v503, 127
    %v545 = vpop.permute.xlu0 %544
    %546 = vrot.lane.b32.xlu0 %v500, 127
    %v547 = vpop.permute.xlu0 %546
    %548 = vrot.lane.b32.xlu0 %v504, 127
    %v549 = vpop.permute.xlu0 %548
    %550 = vrot.lane.b32.xlu0 %v501, 127
    %v551 = vpop.permute.xlu0 %550
    %552 = vrot.lane.b32.xlu0 %v505, 127
    %v553 = vpop.permute.xlu0 %552
    %v554 = vsel %vm201, %v547, %v551
    %v555 = vsel %vm201, %v549, %v553
    %v556 = vsel %vm201, %v543, %v547
    %v557 = vsel %vm201, %v545, %v549
    %v558 = vsel %vm201, %v539, %v543
    %v559 = vsel %vm201, %v541, %v545
    %v560 = vsel %vm201, %v551, %v539
    %v561 = vsel %vm201, %v553, %v541
    %v562 = vmul.f32 %v558, %v148
    %v563 = vmul.f32 %v556, %v149
    %v564 = vmul.f32 %v554, %v150
    %v565 = vmul.f32 %v560, %v151
    %v566 = vmul.f32 %v559, %v148
    %v567 = vmul.f32 %v557, %v149
    %v568 = vmul.f32 %v555, %v150
    %v569 = vmul.f32 %v561, %v151
    %570 = vset.pattern.permute.xlu0 3
    %571 = vperm.xlu0 %570, %v156
    %v572 = vpop.permute.xlu0 %571
    %574 = vset.pattern.permute.xlu0 3
    %575 = vperm.xlu0 %574, %v157
    %v576 = vpop.permute.xlu0 %575
    %vm578 = vcmask 392192
    %v580 = vsel %vm578, %v154, 0
    %v583 = vsel %vm578, %v155, 0
    %585 = vmatpush.msra.mxu0 0.0
    %586 = vmatpush.msra.mxu0 0.0
    %587 = vmatpush.msra.mxu0 0.0
    %588 = vmatpush.msra.mxu0 0.0
    %589 = vmatpush.msra.mxu0 0.0
    %590 = vmatpush.msra.mxu0 0.0
    %591 = vmatpush.msra.mxu0 0.0
    %592 = vmatpush.msra.mxu0 0.0
    %593 = vmatpush.msra.mxu0 0.0
    %594 = vmatpush.msra.mxu0 0.0
    %595 = vmatpush.msra.mxu0 %v566
    %596 = vmatpush.msra.mxu0 %v562
    %597 = vmatpush.msra.mxu0 %v502
    %598 = vmatpush.msra.mxu0 %v498
    %599 = vmatpush.msra.mxu0 %v534
    %600 = vmatpush.msra.mxu0 %v530
    %601 = vmatmul.f32.gmra.mxu0 %v580
    %v602 = vpop.f32.mrf.mxu0
    %v603 = vadd.f32 %v572, %v602
    %604 = vmatmul.f32.gmra.mxu0 %v583
    %v605 = vpop.f32.mrf.mxu0
    %v606 = vadd.f32 %v576, %v605
    %607 = vdwg.mxu0
    %608 = vmatpush.msra.mxu0 0.0
    %609 = vmatpush.msra.mxu0 0.0
    %610 = vmatpush.msra.mxu0 0.0
    %611 = vmatpush.msra.mxu0 0.0
    %612 = vmatpush.msra.mxu0 0.0
    %613 = vmatpush.msra.mxu0 0.0
    %614 = vmatpush.msra.mxu0 0.0
    %615 = vmatpush.msra.mxu0 0.0
    %616 = vmatpush.msra.mxu0 0.0
    %617 = vmatpush.msra.mxu0 0.0
    %618 = vmatpush.msra.mxu0 %v567
    %619 = vmatpush.msra.mxu0 %v563
    %620 = vmatpush.msra.mxu0 %v503
    %621 = vmatpush.msra.mxu0 %v499
    %622 = vmatpush.msra.mxu0 %v535
    %623 = vmatpush.msra.mxu0 %v531
    %624 = vmatmul.f32.gmra.mxu0 %v580
    %v625 = vpop.f32.mrf.mxu0
    %v626 = vadd.f32 %v572, %v625
    %627 = vmatmul.f32.gmra.mxu0 %v583
    %v628 = vpop.f32.mrf.mxu0
    %v629 = vadd.f32 %v576, %v628
    %630 = vdwg.mxu0
    %631 = vmatpush.msra.mxu0 0.0
    %632 = vmatpush.msra.mxu0 0.0
    %633 = vmatpush.msra.mxu0 0.0
    %634 = vmatpush.msra.mxu0 0.0
    %635 = vmatpush.msra.mxu0 0.0
    %636 = vmatpush.msra.mxu0 0.0
    %637 = vmatpush.msra.mxu0 0.0
    %638 = vmatpush.msra.mxu0 0.0
    %639 = vmatpush.msra.mxu0 0.0
    %640 = vmatpush.msra.mxu0 0.0
    %641 = vmatpush.msra.mxu0 %v568
    %642 = vmatpush.msra.mxu0 %v564
    %643 = vmatpush.msra.mxu0 %v504
    %644 = vmatpush.msra.mxu0 %v500
    %645 = vmatpush.msra.mxu0 %v536
    %646 = vmatpush.msra.mxu0 %v532
    %647 = vmatmul.f32.gmra.mxu0 %v580
    %v648 = vpop.f32.mrf.mxu0
    %v649 = vadd.f32 %v572, %v648
    %650 = vmatmul.f32.gmra.mxu0 %v583
    %v651 = vpop.f32.mrf.mxu0
    %v652 = vadd.f32 %v576, %v651
    %653 = vdwg.mxu0
    %654 = vmatpush.msra.mxu0 0.0
    %655 = vmatpush.msra.mxu0 0.0
    %656 = vmatpush.msra.mxu0 0.0
    %657 = vmatpush.msra.mxu0 0.0
    %658 = vmatpush.msra.mxu0 0.0
    %659 = vmatpush.msra.mxu0 0.0
    %660 = vmatpush.msra.mxu0 0.0
    %661 = vmatpush.msra.mxu0 0.0
    %662 = vmatpush.msra.mxu0 0.0
    %663 = vmatpush.msra.mxu0 0.0
    %664 = vmatpush.msra.mxu0 %v569
    %665 = vmatpush.msra.mxu0 %v565
    %666 = vmatpush.msra.mxu0 %v505
    %667 = vmatpush.msra.mxu0 %v501
    %668 = vmatpush.msra.mxu0 %v537
    %669 = vmatpush.msra.mxu0 %v533
    %670 = vmatmul.f32.gmra.mxu0 %v580
    %v671 = vpop.f32.mrf.mxu0
    %v672 = vadd.f32 %v572, %v671
    %673 = vmatmul.f32.gmra.mxu0 %v583
    %v674 = vpop.f32.mrf.mxu0
    %v675 = vadd.f32 %v576, %v674
    %676 = vdwg.mxu0
    %v677 = vmax.f32 %v603, 0.0
    %v678 = vmax.f32 %v626, 0.0
    %v679 = vmax.f32 %v649, 0.0
    %v680 = vmax.f32 %v672, 0.0
    %v681 = vmax.f32 %v606, 0.0
    %v682 = vmax.f32 %v629, 0.0
    %v683 = vmax.f32 %v652, 0.0
    %v684 = vmax.f32 %v675, 0.0
    %v685 = vadd.f32 %v677, %v681
    %v686 = vrot.slane %v685, 4
    %v687 = vadd.f32 %v685, %v686
    %v688 = vrot.slane %v687, 2
    %v689 = vadd.f32 %v687, %v688
    %v690 = vrot.slane %v689, 1
    %v691 = vadd.f32 %v689, %v690
    %v692 = vadd.f32 %v678, %v682
    %v693 = vrot.slane %v692, 4
    %v694 = vadd.f32 %v692, %v693
    %v695 = vrot.slane %v694, 2
    %v696 = vadd.f32 %v694, %v695
    %v697 = vrot.slane %v696, 1
    %v698 = vadd.f32 %v696, %v697
    %v699 = vadd.f32 %v679, %v683
    %v700 = vrot.slane %v699, 4
    %v701 = vadd.f32 %v699, %v700
    %v702 = vrot.slane %v701, 2
    %v703 = vadd.f32 %v701, %v702
    %v704 = vrot.slane %v703, 1
    %v705 = vadd.f32 %v703, %v704
    %v706 = vadd.f32 %v680, %v684
    %v707 = vrot.slane %v706, 4
    %v708 = vadd.f32 %v706, %v707
    %v709 = vrot.slane %v708, 2
    %v710 = vadd.f32 %v708, %v709
    %v711 = vrot.slane %v710, 1
    %v712 = vadd.f32 %v710, %v711
    %v713 = vmul.f32 %v691, %v361
    %v714 = vmul.f32 %v698, %v361
    %v715 = vmul.f32 %v705, %v361
    %v716 = vmul.f32 %v712, %v361
    %v717 = vsub.f32 %v677, %v713
    %v718 = vsub.f32 %v678, %v714
    %v719 = vsub.f32 %v679, %v715
    %v720 = vsub.f32 %v680, %v716
    %v721 = vsub.f32 %v681, %v713
    %v722 = vsub.f32 %v682, %v714
    %v723 = vsub.f32 %v683, %v715
    %v724 = vsub.f32 %v684, %v716
    %v725 = vmul.f32 %v717, %v717
    %v726 = vmul.f32 %v718, %v718
    %v727 = vmul.f32 %v719, %v719
    %v728 = vmul.f32 %v720, %v720
    %v729 = vmul.f32 %v721, %v721
    %v730 = vmul.f32 %v722, %v722
    %v731 = vmul.f32 %v723, %v723
    %v732 = vmul.f32 %v724, %v724
    %v733 = vadd.f32 %v725, %v729
    %v734 = vrot.slane %v733, 4
    %v735 = vadd.f32 %v733, %v734
    %v736 = vrot.slane %v735, 2
    %v737 = vadd.f32 %v735, %v736
    %v738 = vrot.slane %v737, 1
    %v739 = vadd.f32 %v737, %v738
    %v740 = vadd.f32 %v726, %v730
    %v741 = vrot.slane %v740, 4
    %v742 = vadd.f32 %v740, %v741
    %v743 = vrot.slane %v742, 2
    %v744 = vadd.f32 %v742, %v743
    %v745 = vrot.slane %v744, 1
    %v746 = vadd.f32 %v744, %v745
    %v747 = vadd.f32 %v727, %v731
    %v748 = vrot.slane %v747, 4
    %v749 = vadd.f32 %v747, %v748
    %v750 = vrot.slane %v749, 2
    %v751 = vadd.f32 %v749, %v750
    %v752 = vrot.slane %v751, 1
    %v753 = vadd.f32 %v751, %v752
    %v754 = vadd.f32 %v728, %v732
    %v755 = vrot.slane %v754, 4
    %v756 = vadd.f32 %v754, %v755
    %v757 = vrot.slane %v756, 2
    %v758 = vadd.f32 %v756, %v757
    %v759 = vrot.slane %v758, 1
    %v760 = vadd.f32 %v758, %v759
    %v761 = vmul.f32 %v739, %v361
    %v762 = vmul.f32 %v746, %v361
    %v763 = vmul.f32 %v753, %v361
    %v764 = vmul.f32 %v760, %v361
    %v765 = vadd.f32 %v761, 0.0001
    %v766 = vadd.f32 %v762, 0.0001
    %v767 = vadd.f32 %v763, 0.0001
    %v768 = vadd.f32 %v764, 0.0001
    %v769 = vrsqrt.pop %v765
    %v770 = vmul.f32 %v769, %v765
    %v771 = vmul.f32 %v770, %v769
    %v772 = vmul.f32 0.5, %v771
    %v773 = vsub.f32 1.5, %v772
    %v774 = vmul.f32 %v769, %v773
    %vm775 = vweird.f32 %v765
    %vm776 = vweird.f32 %v769
    %vm777 = vmor %vm775, %vm776
    %v778 = vsel %vm777, %v769, %v774
    %v779 = vrsqrt.pop %v766
    %v780 = vmul.f32 %v779, %v766
    %v781 = vmul.f32 %v780, %v779
    %v782 = vmul.f32 0.5, %v781
    %v783 = vsub.f32 1.5, %v782
    %v784 = vmul.f32 %v779, %v783
    %vm785 = vweird.f32 %v766
    %vm786 = vweird.f32 %v779
    %vm787 = vmor %vm785, %vm786
    %v788 = vsel %vm787, %v779, %v784
    %v789 = vrsqrt.pop %v767
    %v790 = vmul.f32 %v789, %v767
    %v791 = vmul.f32 %v790, %v789
    %v792 = vmul.f32 0.5, %v791
    %v793 = vsub.f32 1.5, %v792
    %v794 = vmul.f32 %v789, %v793
    %vm795 = vweird.f32 %v767
    %vm796 = vweird.f32 %v789
    %vm797 = vmor %vm795, %vm796
    %v798 = vsel %vm797, %v789, %v794
    %v799 = vrsqrt.pop %v768
    %v800 = vmul.f32 %v799, %v768
    %v801 = vmul.f32 %v800, %v799
    %v802 = vmul.f32 0.5, %v801
    %v803 = vsub.f32 1.5, %v802
    %v804 = vmul.f32 %v799, %v803
    %vm805 = vweird.f32 %v768
    %vm806 = vweird.f32 %v799
    %vm807 = vmor %vm805, %vm806
    %v808 = vsel %vm807, %v799, %v804
    %v809 = vmul.f32 %v717, %v778
    %v810 = vmul.f32 %v718, %v788
    %v811 = vmul.f32 %v719, %v798
    %v812 = vmul.f32 %v720, %v808
    %v813 = vmul.f32 %v721, %v778
    %v814 = vmul.f32 %v722, %v788
    %v815 = vmul.f32 %v723, %v798
    %v816 = vmul.f32 %v724, %v808
    %817 = vset.pattern.permute.xlu0 4
    %818 = vperm.xlu0 %817, %v156
    %v819 = vpop.permute.xlu0 %818
    %821 = vset.pattern.permute.xlu0 4
    %822 = vperm.xlu0 %821, %v157
    %v823 = vpop.permute.xlu0 %822
    %v825 = vmul.f32 %v809, %v819
    %v826 = vmul.f32 %v810, %v819
    %v827 = vmul.f32 %v811, %v819
    %v828 = vmul.f32 %v812, %v819
    %v829 = vmul.f32 %v813, %v823
    %v830 = vmul.f32 %v814, %v823
    %v831 = vmul.f32 %v815, %v823
    %v832 = vmul.f32 %v816, %v823
    %833 = vset.pattern.permute.xlu0 5
    %834 = vperm.xlu0 %833, %v156
    %v835 = vpop.permute.xlu0 %834
    %837 = vset.pattern.permute.xlu0 5
    %838 = vperm.xlu0 %837, %v157
    %v839 = vpop.permute.xlu0 %838
    %v841 = vadd.f32 %v825, %v835
    %v842 = vadd.f32 %v826, %v835
    %v843 = vadd.f32 %v827, %v835
    %v844 = vadd.f32 %v828, %v835
    %v845 = vadd.f32 %v829, %v839
    %v846 = vadd.f32 %v830, %v839
    %v847 = vadd.f32 %v831, %v839
    %v848 = vadd.f32 %v832, %v839
    %v849 = vmul.f32 %v841, %v164
    %v850 = vmul.f32 %v842, %v165
    %v851 = vmul.f32 %v843, %v166
    %v852 = vmul.f32 %v844, %v167
    %v853 = vmul.f32 %v845, %v164
    %v854 = vmul.f32 %v846, %v165
    %v855 = vmul.f32 %v847, %v166
    %v856 = vmul.f32 %v848, %v167
    %857 = vset.pattern.permute.xlu0 6
    %858 = vperm.xlu0 %857, %v156
    %v859 = vpop.permute.xlu0 %858
    %861 = vset.pattern.permute.xlu0 6
    %862 = vperm.xlu0 %861, %v157
    %v863 = vpop.permute.xlu0 %862
    %v865 = vmul.f32 %v849, %v859
    %v866 = vmul.f32 %v850, %v859
    %v867 = vmul.f32 %v851, %v859
    %v868 = vmul.f32 %v852, %v859
    %v869 = vmul.f32 %v853, %v863
    %v870 = vmul.f32 %v854, %v863
    %v871 = vmul.f32 %v855, %v863
    %v872 = vmul.f32 %v856, %v863
    %v873 = vadd.f32 %v865, %v869
    %v874 = vrot.slane %v873, 4
    %v875 = vadd.f32 %v873, %v874
    %v876 = vrot.slane %v875, 2
    %v877 = vadd.f32 %v875, %v876
    %v878 = vrot.slane %v877, 1
    %v879 = vadd.f32 %v877, %v878
    %v880 = vadd.f32 %v866, %v870
    %v881 = vrot.slane %v880, 4
    %v882 = vadd.f32 %v880, %v881
    %v883 = vrot.slane %v882, 2
    %v884 = vadd.f32 %v882, %v883
    %v885 = vrot.slane %v884, 1
    %v886 = vadd.f32 %v884, %v885
    %v887 = vadd.f32 %v867, %v871
    %v888 = vrot.slane %v887, 4
    %v889 = vadd.f32 %v887, %v888
    %v890 = vrot.slane %v889, 2
    %v891 = vadd.f32 %v889, %v890
    %v892 = vrot.slane %v891, 1
    %v893 = vadd.f32 %v891, %v892
    %v894 = vadd.f32 %v868, %v872
    %v895 = vrot.slane %v894, 4
    %v896 = vadd.f32 %v894, %v895
    %v897 = vrot.slane %v896, 2
    %v898 = vadd.f32 %v896, %v897
    %v899 = vrot.slane %v898, 1
    %v900 = vadd.f32 %v898, %v899
    %901 = vset.pattern.permute.xlu0 7
    %902 = vperm.xlu0 %901, %v156
    %v903 = vpop.permute.xlu0 %902
    %v905 = vadd.f32 %v879, %v903
    %v906 = vadd.f32 %v886, %v903
    %v907 = vadd.f32 %v893, %v903
    %v908 = vadd.f32 %v900, %v903
    %v909 = vmul.f32 %v905, %v164
    %v910 = vmul.f32 %v906, %v165
    %v911 = vmul.f32 %v907, %v166
    %v912 = vmul.f32 %v908, %v167
    %v917 = vrot.slane %v910, 7
    %v918 = vrot.slane %v911, 6
    %v919 = vrot.slane %v912, 5
    %vm920 = vcmask 1040384
    %v921 = vsel %vm920, %v909, %v917
    %vm922 = vcmask 1042434
    %v923 = vsel %vm922, %v918, %v919
    %vm924 = vcmask 1041408
    %v925 = vsel %vm924, %v921, %v923
    %v927 = vlaneseq
    %vm928 = vcmp.ge.s32.totalorder %v927, 0
    %vm929 = vcmp.lt.s32.totalorder %v927, 512
    %vm930 = vmand %vm928, %vm929
    %931 = vst.msk [vmem:[#allocation7] sm:$0xf] %vm930, %v925
    // Predicated region
    $region30: #{tpu_custom_call.1} parent=1 // pred_check
      _
    $region31: #{tpu_custom_call.1} parent=1 // pred_check_branch
      %933 = sbr.rel (0) target = $region33
    $region32: #{tpu_custom_call.1} parent=1 // pred_region
      %935 = vsyncadd [#allocation4], 0
      %s937 = sshll.u32 [#allocation7], 4
      %s938 = int_to_ptr.vmem [resolvable:$true] %s937
      %s939 = sshll.u32 %s5, 4
      %s940 = int_to_ptr.hbm [resolvable:$true] %s939
      %942 = dma.vmem_to_hbm [thread:$0]  %s938, 64, %s940, [#allocation4]
    $region33: #{tpu_custom_call.1} parent=1 // pred_fallthru
      _
    // Predicated region
    $region34: #{tpu_custom_call.1} parent=1 // pred_check
      _
    $region35: #{tpu_custom_call.1} parent=1 // pred_check_branch
      %944 = sbr.rel (0) target = $region37
    $region36: #{tpu_custom_call.1} parent=1 // pred_region
      %946 = dma.done [#allocation4], 64
    $region37: #{tpu_custom_call.1} parent=1 // pred_fallthru
      _
    %947 = vsyncpa [#allocation3], 1
    %948 = vsyncpa [#allocation6], 1
    %949 = vsyncpa [#allocation4], 1

</llo_original>
